<compile_context>
chip_gen: v7x
topology: tpu7x:2x2x1
jax: 0.10.0
libtpu: 0.0.40
codegen_flags: <defaults>
</compile_context>

<pallas_src>
import jax
import jax.numpy as jnp
from jax.experimental import pallas as pl
from jax.experimental.pallas import tpu as pltpu


_MXU_MIN_K = 256                        # below this the MXU is mostly idle; use the VPU.
_VMEM_BLOCK_BUDGET = 2 * 1024 * 1024    # per-x-block budget (double buffer + f32 copy).


def _pick_batch_block(batch, k, w, itemsize):
    """Largest divisor of `batch` whose x block (2x-buffered + f32 copy) fits VMEM budget."""
    per_row = k * w * (2 * itemsize + 4)
    bb = 1
    for cand in range(1, batch + 1):
        if batch % cand == 0 and cand * per_row <= _VMEM_BLOCK_BUDGET:
            bb = cand
    return bb


def _make_kernel(use_mxu):
    def kernel(x_ref, w_ref, r_ref, d_ref, out_ref, r_out_ref, d_out_ref):
        # x_ref : (bb, K, W)  batch-block of rows, original dtype (bf16/f32)
        # w_ref : (1, K) if use_mxu else (K, 1)   conv weight (replicated per step)
        # r_ref : (1, R), d_ref : (1, D)          targets (replicated per step)
        if use_mxu:
            # bb == 1 on this path: (1, K) @ (K, W) -> (1, W) on the MXU.
            x = x_ref[0].astype(jnp.float32)                          # (K, W)
            w = w_ref[...].astype(jnp.float32)                        # (1, K)
            out = jnp.dot(w, x, preferred_element_type=jnp.float32)   # (1, W)
        else:
            # Tiny K: VPU broadcast-multiply + sublane reduce over K, all bb rows at once.
            x = x_ref[...].astype(jnp.float32)                        # (bb, K, W)
            w = w_ref[...].astype(jnp.float32)                        # (K, 1)
            out = jnp.sum(x * w, axis=1)                              # (bb, W)
        out_ref[0] = out

        # argmax over W (first maximal index, matching torch.argmax).
        wdim = out.shape[-1]
        maxv = jnp.max(out, axis=-1, keepdims=True)                         # (bb, 1)
        col = jax.lax.broadcasted_iota(jnp.int32, out.shape, 1)             # (bb, W)
        idx = jnp.min(jnp.where(out == maxv, col, jnp.int32(wdim)),
                      axis=-1, keepdims=True)                               # (bb, 1) i32

        r_tgt = r_ref[...].astype(jnp.float32)   # (1, R)
        d_tgt = d_ref[...].astype(jnp.float32)   # (1, D)
        r_len = r_tgt.shape[1]
        d_len = d_tgt.shape[1]

        # torch: r_index = int(index / len(r_target));
        #        d_index = index - r_index * len(d_target)
        # f32 divide + floor is exact for these magnitudes and avoids int-div lowering.
        r_index = jnp.floor(idx.astype(jnp.float32) /
                            jnp.float32(r_len)).astype(jnp.int32)           # (bb, 1)
        d_index = idx - r_index * d_len                                     # (bb, 1)

        # Vectorized one-hot gather of the tiny target rows (all-VPU, no scalars).
        # NOTE: as in the torch formula, this is only a valid unravel when
        # len(r_target) == len(d_target); an out-of-range d_index yields 0 here.
        r_lane = jax.lax.broadcasted_iota(jnp.int32, r_tgt.shape, 1)        # (1, R)
        d_lane = jax.lax.broadcasted_iota(jnp.int32, d_tgt.shape, 1)        # (1, D)
        r_val = jnp.sum(jnp.where(r_lane == r_index, r_tgt, 0.0),
                        axis=-1, keepdims=True)                             # (bb, 1)
        d_val = jnp.sum(jnp.where(d_lane == d_index, d_tgt, 0.0),
                        axis=-1, keepdims=True)                             # (bb, 1)

        # torch writes float targets into int ones_like(index) -> truncation toward 0.
        r_out_ref[0] = r_val.astype(jnp.int32)
        d_out_ref[0] = d_val.astype(jnp.int32)

    return kernel


def cmfp_multitask_forward(x_nchw, r_target, d_target, weight):
    """Fused CMFP conv + argmax + target lookup.

    x_nchw: (B, C, H, W) with H == M_array
    weight: (1, C, M, 1)  torch Conv2d weight layout
    Returns: outputs (B, W) f32, r (B,) i32, d (B,) i32
    """
    B, C, H, W = x_nchw.shape
    _, Cw, M, _ = weight.shape
    assert C == Cw and H == M, "CMFP expects H == M_array so squeeze yields (B, W)"
    K = C * M
    R = int(r_target.shape[0])
    D = int(d_target.shape[0])

    use_mxu = K >= _MXU_MIN_K
    bb = 1 if use_mxu else _pick_batch_block(B, K, W, x_nchw.dtype.itemsize)
    nb = B // bb

    # Metadata-only reshapes; NO dtype casts in the wrapper (casts happen in VMEM).
    x3 = x_nchw.reshape(B, K, W)
    w2 = weight.reshape(1, K) if use_mxu else weight.reshape(K, 1)
    r2 = r_target.reshape(1, R)
    d2 = d_target.reshape(1, D)

    cost = pl.CostEstimate(
        flops=2 * B * K * W,
        transcendentals=0,
        bytes_accessed=(B * K * W * x3.dtype.itemsize
                        + K * w2.dtype.itemsize
                        + R * r2.dtype.itemsize + D * d2.dtype.itemsize
                        + B * W * 4 + 2 * B * 4),
    )

    out3, r3, d3 = pl.pallas_call(
        _make_kernel(use_mxu),
        grid=(nb,),
        out_shape=(
            jax.ShapeDtypeStruct((nb, bb, W), jnp.float32),
            jax.ShapeDtypeStruct((nb, bb, 1), jnp.int32),
            jax.ShapeDtypeStruct((nb, bb, 1), jnp.int32),
        ),
        in_specs=[
            pl.BlockSpec((bb, K, W), lambda b: (b, 0, 0)),   # x: bb batch rows / step
            pl.BlockSpec(w2.shape, lambda b: (0, 0)),        # weight (replicated)
            pl.BlockSpec((1, R), lambda b: (0, 0)),          # r_target (replicated)
            pl.BlockSpec((1, D), lambda b: (0, 0)),          # d_target (replicated)
        ],
        out_specs=(
            pl.BlockSpec((1, bb, W), lambda b: (b, 0, 0)),
            pl.BlockSpec((1, bb, 1), lambda b: (b, 0, 0)),
            pl.BlockSpec((1, bb, 1), lambda b: (b, 0, 0)),
        ),
        compiler_params=pltpu.CompilerParams(dimension_semantics=("parallel",)),
        cost_estimate=cost,
    )(x3, w2, r2, d2)

    outputs = out3.reshape(B, W)   # metadata-only reshapes
    r = r3.reshape(B)
    d = d3.reshape(B)
    return outputs, r, d


def multi_task_loss_wrapper(input_feature, r_target, d_target, weight):
    """Mirrors MultiTaskLossWrapper.forward -> (outputs, d, [r, d])."""
    outputs, r, d = cmfp_multitask_forward(input_feature, r_target, d_target, weight)
    output = [r, d]
    return outputs, d, output


if __name__ == "__main__":
    key = jax.random.PRNGKey(0)
    k_x, k_w, k_r, k_d = jax.random.split(key, 4)

    B, C, M, W = 2, 4, 16, 16        # input (B, C, H=M, W)
    x = jax.random.normal(k_x, (B, C, M, W), dtype=jnp.float32)

    # Conv2d(in_channels=C, out_channels=1, kernel_size=(M,1), bias=False) weight
    weight = jax.random.normal(k_w, (1, C, M, 1), dtype=jnp.float32) * 0.1

    # targets: lengths chosen so the torch index formula stays in bounds (W <= R*D)
    r_target = jax.random.uniform(k_r, (4,), dtype=jnp.float32) * 10.0
    d_target = jax.random.uniform(k_d, (4,), dtype=jnp.float32) * 10.0

    outputs, d, output = multi_task_loss_wrapper(x, r_target, d_target, weight)
    jax.block_until_ready((outputs, d, output[0], output[1]))

    # Pure-JAX reference (same math as the torch module) for a sanity check.
    ref_out = jnp.einsum("bcmw,cm->bw", x, weight[0, :, :, 0])
    ref_idx = jnp.argmax(ref_out, axis=1)
    ref_r_idx = ref_idx // r_target.shape[0]
    ref_d_idx = ref_idx - ref_r_idx * d_target.shape[0]
    ref_r = r_target[ref_r_idx].astype(jnp.int32)
    ref_d = d_target[ref_d_idx].astype(jnp.int32)
    assert jnp.allclose(outputs, ref_out, rtol=1e-5, atol=1e-5)
    assert jnp.array_equal(output[0], ref_r)
    assert jnp.array_equal(d, ref_d)

    print("KERNEL_OK")
</pallas_src>

<mosaic_0001>
module attributes {stable_mosaic.version = 11 : i64} {
  func.func @kernel(%arg0: i32, %arg1: memref<2x64x16xf32, #tpu.memory_space<vmem>>, %arg2: memref<64x1xf32, #tpu.memory_space<vmem>>, %arg3: memref<1x4xf32, #tpu.memory_space<vmem>>, %arg4: memref<1x4xf32, #tpu.memory_space<vmem>>, %arg5: memref<1x2x16xf32, #tpu.memory_space<vmem>>, %arg6: memref<1x2x1xi32, #tpu.memory_space<vmem>>, %arg7: memref<1x2x1xi32, #tpu.memory_space<vmem>>) attributes {dimension_semantics = [#tpu.dimension_semantics<parallel>], iteration_bounds = array<i64: 1>, scalar_prefetch = 0 : i64, scratch_operands = 0 : i64, tpu.core_type = #tpu.core_type<tc>, window_params = [{transform_indices = @transform_0, window_bounds = array<i64: 2, 64, 16>}, {pipeline_mode = #tpu.pipeline_mode<synchronous>, transform_indices = @transform_1, window_bounds = array<i64: 64, 1>}, {pipeline_mode = #tpu.pipeline_mode<synchronous>, transform_indices = @transform_2, window_bounds = array<i64: 1, 4>}, {pipeline_mode = #tpu.pipeline_mode<synchronous>, transform_indices = @transform_3, window_bounds = array<i64: 1, 4>}, {transform_indices = @transform_4, window_bounds = array<i64: 1, 2, 16>}, {transform_indices = @transform_5, window_bounds = array<i64: 1, 2, 1>}, {transform_indices = @transform_6, window_bounds = array<i64: 1, 2, 1>}]} {
    %c0 = arith.constant 0 : index
    %c0_0 = arith.constant 0 : index
    %c0_1 = arith.constant 0 : index
    %0 = vector.load %arg1[%c0, %c0_0, %c0_1] : memref<2x64x16xf32, #tpu.memory_space<vmem>>, vector<2x64x16xf32>
    %c0_2 = arith.constant 0 : index
    %c0_3 = arith.constant 0 : index
    %1 = vector.load %arg2[%c0_2, %c0_3] : memref<64x1xf32, #tpu.memory_space<vmem>>, vector<64x1xf32>
    %2 = vector.shape_cast %1 : vector<64x1xf32> to vector<1x64x1xf32>
    %3 = vector.broadcast %2 : vector<1x64x1xf32> to vector<2x64x16xf32>
    %4 = arith.mulf %0, %3 : vector<2x64x16xf32>
    %cst = arith.constant dense<0.000000e+00> : vector<2x16xf32>
    %5 = vector.multi_reduction <add>, %4, %cst [1] : vector<2x64x16xf32> to vector<2x16xf32>
    %c0_4 = arith.constant 0 : index
    %c0_5 = arith.constant 0 : index
    %c0_6 = arith.constant 0 : index
    %6 = vector.load %arg5[%c0_4, %c0_5, %c0_6] : memref<1x2x16xf32, #tpu.memory_space<vmem>>, vector<1x2x16xf32>
    %7 = vector.shape_cast %6 : vector<1x2x16xf32> to vector<2x16xf32>
    %8 = vector.shape_cast %5 : vector<2x16xf32> to vector<1x2x16xf32>
    tpu.vector_store %arg5[%c0_4, %c0_5, %c0_6], %8 {strides = array<i32>} : memref<1x2x16xf32, #tpu.memory_space<vmem>>, vector<1x2x16xf32>,
    %cst_7 = arith.constant dense<0xFF800000> : vector<2xf32>
    %9 = vector.multi_reduction <maximumf>, %5, %cst_7 [1] : vector<2x16xf32> to vector<2xf32>
    %10 = vector.shape_cast %9 : vector<2xf32> to vector<2x1xf32>
    %11 = tpu.iota {dimensions = array<i32: 1>} : vector<2x16xi32>
    %12 = vector.broadcast %10 : vector<2x1xf32> to vector<2x16xf32>
    %13 = arith.cmpf oeq, %5, %12 : vector<2x16xf32>
    %c16_i32 = arith.constant 16 : i32
    %14 = vector.broadcast %c16_i32 : i32 to vector<2x16xi32>
    %15 = arith.select %13, %11, %14 : vector<2x16xi1>, vector<2x16xi32>
    %cst_8 = arith.constant dense<2147483647> : vector<2xi32>
    %16 = vector.multi_reduction <minsi>, %15, %cst_8 [1] : vector<2x16xi32> to vector<2xi32>
    %17 = vector.shape_cast %16 : vector<2xi32> to vector<2x1xi32>
    %c0_9 = arith.constant 0 : index
    %c0_10 = arith.constant 0 : index
    %18 = vector.load %arg3[%c0_9, %c0_10] : memref<1x4xf32, #tpu.memory_space<vmem>>, vector<1x4xf32>
    %c0_11 = arith.constant 0 : index
    %c0_12 = arith.constant 0 : index
    %19 = vector.load %arg4[%c0_11, %c0_12] : memref<1x4xf32, #tpu.memory_space<vmem>>, vector<1x4xf32>
    %20 = arith.sitofp %17 : vector<2x1xi32> to vector<2x1xf32>
    %cst_13 = arith.constant 4.000000e+00 : f32
    %21 = vector.broadcast %cst_13 : f32 to vector<2x1xf32>
    %22 = arith.divf %20, %21 : vector<2x1xf32>
    %23 = math.floor %22 : vector<2x1xf32>
    %24 = arith.fptosi %23 : vector<2x1xf32> to vector<2x1xi32>
    %c4_i32 = arith.constant 4 : i32
    %25 = vector.broadcast %c4_i32 : i32 to vector<2x1xi32>
    %26 = arith.muli %24, %25 : vector<2x1xi32>
    %27 = arith.subi %17, %26 : vector<2x1xi32>
    %28 = tpu.iota {dimensions = array<i32: 1>} : vector<1x4xi32>
    %29 = tpu.iota {dimensions = array<i32: 1>} : vector<1x4xi32>
    %30 = vector.broadcast %28 : vector<1x4xi32> to vector<2x4xi32>
    %31 = vector.broadcast %24 : vector<2x1xi32> to vector<2x4xi32>
    %32 = arith.cmpi eq, %30, %31 : vector<2x4xi32>
    %cst_14 = arith.constant 0.000000e+00 : f32
    %33 = vector.shape_cast %18 : vector<1x4xf32> to vector<1x4xf32>
    %34 = vector.broadcast %33 : vector<1x4xf32> to vector<2x4xf32>
    %35 = vector.broadcast %cst_14 : f32 to vector<2x4xf32>
    %36 = arith.select %32, %34, %35 : vector<2x4xi1>, vector<2x4xf32>
    %cst_15 = arith.constant dense<0.000000e+00> : vector<2xf32>
    %37 = vector.multi_reduction <add>, %36, %cst_15 [1] : vector<2x4xf32> to vector<2xf32>
    %38 = vector.shape_cast %37 : vector<2xf32> to vector<2x1xf32>
    %39 = vector.broadcast %29 : vector<1x4xi32> to vector<2x4xi32>
    %40 = vector.broadcast %27 : vector<2x1xi32> to vector<2x4xi32>
    %41 = arith.cmpi eq, %39, %40 : vector<2x4xi32>
    %cst_16 = arith.constant 0.000000e+00 : f32
    %42 = vector.shape_cast %19 : vector<1x4xf32> to vector<1x4xf32>
    %43 = vector.broadcast %42 : vector<1x4xf32> to vector<2x4xf32>
    %44 = vector.broadcast %cst_16 : f32 to vector<2x4xf32>
    %45 = arith.select %41, %43, %44 : vector<2x4xi1>, vector<2x4xf32>
    %cst_17 = arith.constant dense<0.000000e+00> : vector<2xf32>
    %46 = vector.multi_reduction <add>, %45, %cst_17 [1] : vector<2x4xf32> to vector<2xf32>
    %47 = vector.shape_cast %46 : vector<2xf32> to vector<2x1xf32>
    %48 = arith.fptosi %38 : vector<2x1xf32> to vector<2x1xi32>
    %c0_18 = arith.constant 0 : index
    %c0_19 = arith.constant 0 : index
    %c0_20 = arith.constant 0 : index
    %49 = vector.load %arg6[%c0_18, %c0_19, %c0_20] : memref<1x2x1xi32, #tpu.memory_space<vmem>>, vector<1x2x1xi32>
    %50 = vector.shape_cast %49 : vector<1x2x1xi32> to vector<2x1xi32>
    %51 = vector.shape_cast %48 : vector<2x1xi32> to vector<1x2x1xi32>
    tpu.vector_store %arg6[%c0_18, %c0_19, %c0_20], %51 {strides = array<i32>} : memref<1x2x1xi32, #tpu.memory_space<vmem>>, vector<1x2x1xi32>,
    %52 = arith.fptosi %47 : vector<2x1xf32> to vector<2x1xi32>
    %c0_21 = arith.constant 0 : index
    %c0_22 = arith.constant 0 : index
    %c0_23 = arith.constant 0 : index
    %53 = vector.load %arg7[%c0_21, %c0_22, %c0_23] : memref<1x2x1xi32, #tpu.memory_space<vmem>>, vector<1x2x1xi32>
    %54 = vector.shape_cast %53 : vector<1x2x1xi32> to vector<2x1xi32>
    %55 = vector.shape_cast %52 : vector<2x1xi32> to vector<1x2x1xi32>
    tpu.vector_store %arg7[%c0_21, %c0_22, %c0_23], %55 {strides = array<i32>} : memref<1x2x1xi32, #tpu.memory_space<vmem>>, vector<1x2x1xi32>,
    return
  }
  func.func @transform_0(%arg0: i32) -> (i32, i32, i32) {
    %c0_i32 = arith.constant 0 : i32
    %c0_i32_0 = arith.constant 0 : i32
    %c0_i32_1 = arith.constant 0 : i32
    return %arg0, %c0_i32, %c0_i32_0 : i32, i32, i32
  }
  func.func @transform_1(%arg0: i32) -> (i32, i32) {
    %c0_i32 = arith.constant 0 : i32
    %c0_i32_0 = arith.constant 0 : i32
    %c0_i32_1 = arith.constant 0 : i32
    return %c0_i32, %c0_i32_0 : i32, i32
  }
  func.func @transform_2(%arg0: i32) -> (i32, i32) {
    %c0_i32 = arith.constant 0 : i32
    %c0_i32_0 = arith.constant 0 : i32
    %c0_i32_1 = arith.constant 0 : i32
    return %c0_i32, %c0_i32_0 : i32, i32
  }
  func.func @transform_3(%arg0: i32) -> (i32, i32) {
    %c0_i32 = arith.constant 0 : i32
    %c0_i32_0 = arith.constant 0 : i32
    %c0_i32_1 = arith.constant 0 : i32
    return %c0_i32, %c0_i32_0 : i32, i32
  }
  func.func @transform_4(%arg0: i32) -> (i32, i32, i32) {
    %c0_i32 = arith.constant 0 : i32
    %c0_i32_0 = arith.constant 0 : i32
    %c0_i32_1 = arith.constant 0 : i32
    return %arg0, %c0_i32, %c0_i32_0 : i32, i32, i32
  }
  func.func @transform_5(%arg0: i32) -> (i32, i32, i32) {
    %c0_i32 = arith.constant 0 : i32
    %c0_i32_0 = arith.constant 0 : i32
    %c0_i32_1 = arith.constant 0 : i32
    return %arg0, %c0_i32, %c0_i32_0 : i32, i32, i32
  }
  func.func @transform_6(%arg0: i32) -> (i32, i32, i32) {
    %c0_i32 = arith.constant 0 : i32
    %c0_i32_0 = arith.constant 0 : i32
    %c0_i32_1 = arith.constant 0 : i32
    return %arg0, %c0_i32, %c0_i32_0 : i32, i32, i32
  }
}

</mosaic_0001>

<llo_original>
// kernel: tpu_custom_call.1
$region0: #{tpu_custom_call.1}
  #allocation0 [shape = 'u32[]', space=smem, size = 0x4, offset = 0x4, fixed_abs, tag = 'smem constant byte address 0x4 - core index']
  #allocation1 [shape = 'u32[144,128]{1,0:T(1,128)}', space=vmem, size = 0x12000, scoped, tag = 'internal scratch']
  %s0 = inlined_call_operand.vmem [shape: f32[2,64,16], index: 0, kind: input, shape index: {}]
  %s1 = inlined_call_operand.vmem [shape: f32[64,1], index: 1, kind: input, shape index: {}]
  %s2 = inlined_call_operand.vmem [shape: f32[1,4], index: 2, kind: input, shape index: {}]
  %s3 = inlined_call_operand.vmem [shape: f32[1,4], index: 3, kind: input, shape index: {}]
  %s4 = inlined_call_operand.hbm [shape: f32[1,2,16], index: 4, kind: output, shape index: {0}]
  %s5 = inlined_call_operand.vmem [shape: s32[1,2,1], index: 5, kind: output, shape index: {1}]
  %s6 = inlined_call_operand.vmem [shape: s32[1,2,1], index: 6, kind: output, shape index: {2}]
  %7 = xla_tuple %s4, %s5, %s6
  %s8 = sld [smem:[#allocation0]]
  $region42: #{tpu_custom_call.1} parent=0
    _
  %s10 = ssub.s32 1, %s8
  %s11 = scalar_select 0, %s10, %s8
  $region1: #{tpu_custom_call.1} parent=0
    #allocation2 [shape = 'u8[1024]{0}', space=vmem, size = 0x400, scoped, tag = 'output window, operand 0, single buffered']
    #allocation3 [shape = 's32[1]{0}', space=sflag, size = 0x4, scoped, tag = 'scoped memory for tpu_custom_call.1']
    %12 = vsyncpa [#allocation3], 0
    // Predicated region
    $region2: #{tpu_custom_call.1} parent=1 // pred_check
      _
    $region3: #{tpu_custom_call.1} parent=1 // pred_check_branch
      %14 = sbr.rel (0) target = $region5
    $region4: #{tpu_custom_call.1} parent=1 // pred_region
      _
    $region5: #{tpu_custom_call.1} parent=1 // pred_fallthru
      _
    // Predicated region
    $region6: #{tpu_custom_call.1} parent=1 // pred_check
      _
    $region7: #{tpu_custom_call.1} parent=1 // pred_check_branch
      %16 = sbr.rel (0) target = $region9
    $region8: #{tpu_custom_call.1} parent=1 // pred_region
      _
    $region9: #{tpu_custom_call.1} parent=1 // pred_fallthru
      _
    // Predicated region
    $region10: #{tpu_custom_call.1} parent=1 // pred_check
      _
    $region11: #{tpu_custom_call.1} parent=1 // pred_check_branch
      %18 = sbr.rel (0) target = $region13
    $region12: #{tpu_custom_call.1} parent=1 // pred_region
      _
    $region13: #{tpu_custom_call.1} parent=1 // pred_fallthru
      _
    // Predicated region
    $region14: #{tpu_custom_call.1} parent=1 // pred_check
      _
    $region15: #{tpu_custom_call.1} parent=1 // pred_check_branch
      %20 = sbr.rel (0) target = $region17
    $region16: #{tpu_custom_call.1} parent=1 // pred_region
      _
    $region17: #{tpu_custom_call.1} parent=1 // pred_fallthru
      _
    %v21 = vld [vmem:[%s0] sm:$0xff]
    %v22 = vld [vmem:[%s0 + $0x8] sm:$0xff]
    %v23 = vld [vmem:[%s0 + $0x10] sm:$0xff]
    %v24 = vld [vmem:[%s0 + $0x18] sm:$0xff]
    %v25 = vld [vmem:[%s0 + $0x20] sm:$0xff]
    %v26 = vld [vmem:[%s0 + $0x28] sm:$0xff]
    %v27 = vld [vmem:[%s0 + $0x30] sm:$0xff]
    %v28 = vld [vmem:[%s0 + $0x38] sm:$0xff]
    %v29 = vld [vmem:[%s0 + $0x40] sm:$0xff]
    %v30 = vld [vmem:[%s0 + $0x48] sm:$0xff]
    %v31 = vld [vmem:[%s0 + $0x50] sm:$0xff]
    %v32 = vld [vmem:[%s0 + $0x58] sm:$0xff]
    %v33 = vld [vmem:[%s0 + $0x60] sm:$0xff]
    %v34 = vld [vmem:[%s0 + $0x68] sm:$0xff]
    %v35 = vld [vmem:[%s0 + $0x70] sm:$0xff]
    %v36 = vld [vmem:[%s0 + $0x78] sm:$0xff]
    %v37 = vld [vmem:[%s1] sm:$0xff]
    %v38 = vld [vmem:[%s1 + $0x8] sm:$0xff]
    %v39 = vld [vmem:[%s1 + $0x10] sm:$0xff]
    %v40 = vld [vmem:[%s1 + $0x18] sm:$0xff]
    %v41 = vld [vmem:[%s1 + $0x20] sm:$0xff]
    %v42 = vld [vmem:[%s1 + $0x28] sm:$0xff]
    %v43 = vld [vmem:[%s1 + $0x30] sm:$0xff]
    %v44 = vld [vmem:[%s1 + $0x38] sm:$0xff]
    %46 = vset.pattern.permute.xlu0 0
    %47 = vperm.xlu0 %46, %v37
    %v48 = vpop.permute.xlu0 %47
    %51 = vset.pattern.permute.xlu0 0
    %52 = vperm.xlu0 %51, %v38
    %v53 = vpop.permute.xlu0 %52
    %56 = vset.pattern.permute.xlu0 0
    %57 = vperm.xlu0 %56, %v39
    %v58 = vpop.permute.xlu0 %57
    %61 = vset.pattern.permute.xlu0 0
    %62 = vperm.xlu0 %61, %v40
    %v63 = vpop.permute.xlu0 %62
    %66 = vset.pattern.permute.xlu0 0
    %67 = vperm.xlu0 %66, %v41
    %v68 = vpop.permute.xlu0 %67
    %71 = vset.pattern.permute.xlu0 0
    %72 = vperm.xlu0 %71, %v42
    %v73 = vpop.permute.xlu0 %72
    %76 = vset.pattern.permute.xlu0 0
    %77 = vperm.xlu0 %76, %v43
    %v78 = vpop.permute.xlu0 %77
    %81 = vset.pattern.permute.xlu0 0
    %82 = vperm.xlu0 %81, %v44
    %v83 = vpop.permute.xlu0 %82
    %v85 = vmul.f32 %v21, %v48
    %v86 = vmul.f32 %v22, %v53
    %v87 = vmul.f32 %v23, %v58
    %v88 = vmul.f32 %v24, %v63
    %v89 = vmul.f32 %v25, %v68
    %v90 = vmul.f32 %v26, %v73
    %v91 = vmul.f32 %v27, %v78
    %v92 = vmul.f32 %v28, %v83
    %v93 = vmul.f32 %v29, %v48
    %v94 = vmul.f32 %v30, %v53
    %v95 = vmul.f32 %v31, %v58
    %v96 = vmul.f32 %v32, %v63
    %v97 = vmul.f32 %v33, %v68
    %v98 = vmul.f32 %v34, %v73
    %v99 = vmul.f32 %v35, %v78
    %v100 = vmul.f32 %v36, %v83
    %vm101 = vcmask 130048
    %v102 = vsel %vm101, %v85, 0.0
    %v103 = vsel %vm101, %v86, 0.0
    %v104 = vadd.f32 %v102, %v103
    %v105 = vsel %vm101, %v87, 0.0
    %v106 = vadd.f32 %v104, %v105
    %v107 = vsel %vm101, %v88, 0.0
    %v108 = vadd.f32 %v106, %v107
    %v109 = vsel %vm101, %v89, 0.0
    %v110 = vadd.f32 %v108, %v109
    %v111 = vsel %vm101, %v90, 0.0
    %v112 = vadd.f32 %v110, %v111
    %v113 = vsel %vm101, %v91, 0.0
    %v114 = vadd.f32 %v112, %v113
    %v115 = vsel %vm101, %v92, 0.0
    %v116 = vadd.f32 %v114, %v115
    %v117 = vrot.slane %v116, 4
    %v118 = vadd.f32 %v116, %v117
    %v119 = vrot.slane %v118, 2
    %v120 = vadd.f32 %v118, %v119
    %v121 = vrot.slane %v120, 1
    %v122 = vadd.f32 %v120, %v121
    %v123 = vsel %vm101, %v93, 0.0
    %v124 = vsel %vm101, %v94, 0.0
    %v125 = vadd.f32 %v123, %v124
    %v126 = vsel %vm101, %v95, 0.0
    %v127 = vadd.f32 %v125, %v126
    %v128 = vsel %vm101, %v96, 0.0
    %v129 = vadd.f32 %v127, %v128
    %v130 = vsel %vm101, %v97, 0.0
    %v131 = vadd.f32 %v129, %v130
    %v132 = vsel %vm101, %v98, 0.0
    %v133 = vadd.f32 %v131, %v132
    %v134 = vsel %vm101, %v99, 0.0
    %v135 = vadd.f32 %v133, %v134
    %v136 = vsel %vm101, %v100, 0.0
    %v137 = vadd.f32 %v135, %v136
    %v138 = vrot.slane %v137, 4
    %v139 = vadd.f32 %v137, %v138
    %v140 = vrot.slane %v139, 2
    %v141 = vadd.f32 %v139, %v140
    %v142 = vrot.slane %v141, 1
    %v143 = vadd.f32 %v141, %v142
    %vm146 = vcmask 1041409
    %v147 = vsel %vm146, %v143, %v122
    %vm149 = vcmask 123904
    %150 = vst.msk [vmem:[#allocation2] sm:$0x3] %vm149, %v147
    %v151 = vsel %vm149, %v147, -inf
    %152 = vmax.xlane.f32.xlu0 %v151
    %v153 = vpop.xlane.xlu0 %152
    %v154 = vlaneseq
    %v155 = vand.u32 %v154, 127
    %v157 = vrot.slane %v153, 1
    %vm160 = vcmp.eq.f32.partialorder %v122, %v153
    %vm161 = vcmp.eq.f32.partialorder %v143, %v157
    %v162 = vsel %vm160, %v155, 16
    %v163 = vsel %vm161, %v155, 16
    %v164 = vrot.slane %v163, 7
    %v165 = vsel %vm146, %v164, %v162
    %v166 = vsel %vm149, %v165, 2147483647
    %v167 = vand.u32 %v166, 65535
    %v168 = vshra.s32 %v166, 16
    %v169 = vcvt.s32.f32 %v167
    %v170 = vcvt.s32.f32 %v168
    %171 = vmin.xlane.f32.xlu0 %v170
    %v172 = vpop.xlane.xlu0 %171
    %vm173 = vcmp.eq.f32.partialorder %v170, %v172
    %v174 = vsel %vm173, %v169, inf
    %175 = vmin.xlane.f32.xlu0 %v174
    %v176 = vpop.xlane.xlu0 %175
    %v177 = vcvt.f32.s32 %v176
    %v178 = vcvt.f32.s32 %v172
    %v179 = vshll.u32 %v178, 16
    %v180 = vadd.s32 %v179, %v177
    %v181 = vld [vmem:[%s2] sm:$0x1]
    %v182 = vld [vmem:[%s3] sm:$0x1]
    %v183 = vcvt.s32.f32 %v180
    %v184 = vrcp.pop 4.0
    %v185 = vmul.f32 %v183, %v184
    %v186 = vfloor.f32 %v185
    %v187 = vcvt.f32.s32.to.zero.pseudo %v186
    %v188 = vmul.u32 %v187, 4
    %v189 = vsub.s32 %v180, %v188
    %vm190 = vcmp.eq.s32.totalorder %v155, %v187
    %v192 = vlaneseq
    %v193 = vshrl.u32 %v192, 7
    %v194 = vsub.s32 0, %v193
    %v195 = vrot.slane %v181, %v194
    %v197 = vsel %vm190, %v195, 0.0
    %vm198 = vcmask 25600
    %v199 = vsel %vm198, %v197, 0.0
    %200 = vadd.xlane.f32.xlu0 %v199
    %v201 = vpop.xlane.xlu0 %200
    %vm202 = vcmp.eq.s32.totalorder %v155, %v189
    %v204 = vlaneseq
    %v205 = vshrl.u32 %v204, 7
    %v206 = vsub.s32 0, %v205
    %v207 = vrot.slane %v182, %v206
    %v209 = vsel %vm202, %v207, 0.0
    %v210 = vsel %vm198, %v209, 0.0
    %211 = vadd.xlane.f32.xlu0 %v210
    %v212 = vpop.xlane.xlu0 %211
    %v213 = vcvt.f32.s32.to.zero.pseudo %v201
    %vm214 = vcmask 1024
    %215 = vst.msk [vmem:[%s5] sm:$0x3] %vm214, %v213
    %v216 = vcvt.f32.s32.to.zero.pseudo %v212
    %217 = vst.msk [vmem:[%s6] sm:$0x3] %vm214, %v216
    // Predicated region
    $region18: #{tpu_custom_call.1} parent=1 // pred_check
      _
    $region19: #{tpu_custom_call.1} parent=1 // pred_check_branch
      %219 = sbr.rel (0) target = $region21
    $region20: #{tpu_custom_call.1} parent=1 // pred_region
      %s221 = ssub.s32 32, 32
      %222 = vsyncadd [#allocation3], %s221
      %s224 = sshll.u32 [#allocation2], 4
      %s225 = int_to_ptr.vmem [resolvable:$true] %s224
      %227 = dma.vmem_to_hbm [thread:$0]  %s225, 32, %s4, [#allocation3]
    $region21: #{tpu_custom_call.1} parent=1 // pred_fallthru
      _
    // Predicated region
    $region22: #{tpu_custom_call.1} parent=1 // pred_check
      _
    $region23: #{tpu_custom_call.1} parent=1 // pred_check_branch
      %229 = sbr.rel (0) target = $region25
    $region24: #{tpu_custom_call.1} parent=1 // pred_region
      _
    $region25: #{tpu_custom_call.1} parent=1 // pred_fallthru
      _
    // Predicated region
    $region26: #{tpu_custom_call.1} parent=1 // pred_check
      _
    $region27: #{tpu_custom_call.1} parent=1 // pred_check_branch
      %231 = sbr.rel (0) target = $region29
    $region28: #{tpu_custom_call.1} parent=1 // pred_region
      _
    $region29: #{tpu_custom_call.1} parent=1 // pred_fallthru
      _
    // Predicated region
    $region30: #{tpu_custom_call.1} parent=1 // pred_check
      _
    $region31: #{tpu_custom_call.1} parent=1 // pred_check_branch
      %233 = sbr.rel (0) target = $region33
    $region32: #{tpu_custom_call.1} parent=1 // pred_region
      %234 = dma.done [#allocation3], 32
    $region33: #{tpu_custom_call.1} parent=1 // pred_fallthru
      _
    // Predicated region
    $region34: #{tpu_custom_call.1} parent=1 // pred_check
      _
    $region35: #{tpu_custom_call.1} parent=1 // pred_check_branch
      %236 = sbr.rel (0) target = $region37
    $region36: #{tpu_custom_call.1} parent=1 // pred_region
      _
    $region37: #{tpu_custom_call.1} parent=1 // pred_fallthru
      _
    // Predicated region
    $region38: #{tpu_custom_call.1} parent=1 // pred_check
      _
    $region39: #{tpu_custom_call.1} parent=1 // pred_check_branch
      %238 = sbr.rel (0) target = $region41
    $region40: #{tpu_custom_call.1} parent=1 // pred_region
      _
    $region41: #{tpu_custom_call.1} parent=1 // pred_fallthru
      _
    %239 = vsyncpa [#allocation3], 1

</llo_original>
